<compile_context>
chip_gen: v7x
topology: tpu7x:2x2x1
jax: 0.10.0
libtpu: 0.0.40
codegen_flags: <defaults>
</compile_context>

<pallas_src>
import functools

import jax
import jax.numpy as jnp
from jax import lax
from jax.experimental import pallas as pl
from jax.experimental.pallas import tpu as pltpu


def _round_up(n, m):
    return (n + m - 1) // m * m


# ---------------------------------------------------------------------------
# Kernel: one grid step == `layers_per_step` EncoderLSTM layers.
# ---------------------------------------------------------------------------
def _encoder_rnns_kernel(x_ref, wcomb_ref, bcomb_ref, wout_ref, bout_ref,
                         o_ref, act_ref, *, model_dim, layers_per_step):
    step = pl.program_id(0)

    # First step: load the (padded) input into the persistent VMEM activation.
    @pl.when(step == 0)
    def _():
        act_ref[...] = x_ref[...].astype(act_ref.dtype)

    act = act_ref[...]                       # (Bp, Dp), weight compute dtype
    h_pad = wcomb_ref.shape[-1] // 3         # padded model_dim (static)
    inv_h = 1.0 / model_dim

    out = None
    for li in range(layers_per_step):        # static unroll over fused layers
        # Fused fc + LSTM-input matmul: gates = x @ (Wfc @ Wih[:, i|g|o]) + b
        gates = jnp.dot(act, wcomb_ref[li],
                        preferred_element_type=jnp.float32) + bcomb_ref[li]

        i_g = jax.nn.sigmoid(gates[:, 0 * h_pad:1 * h_pad])
        g_g = jnp.tanh(gates[:, 1 * h_pad:2 * h_pad])
        o_g = jax.nn.sigmoid(gates[:, 2 * h_pad:3 * h_pad])
        h_lstm = o_g * jnp.tanh(i_g * g_g)   # forget gate dropped: c0 == 0

        # Single-pass LayerNorm stats over the REAL model_dim.  Padded tail
        # columns of h_lstm are exactly 0 (zero weights/bias -> tanh(0)==0),
        # so plain sums are already correct and no mask is needed.
        s1 = jnp.sum(h_lstm, axis=-1, keepdims=True)
        s2 = jnp.sum(h_lstm * h_lstm, axis=-1, keepdims=True)
        mean = s1 * inv_h
        var = s2 * inv_h - mean * mean
        norm = (h_lstm - mean) * lax.rsqrt(var + 1e-5)
        # Padded columns of `norm` hold -mean*rsqrt, but the matching rows of
        # Wout are zero, so the output matmul (and its padded columns) stay 0.

        out = jnp.dot(norm.astype(wout_ref.dtype), wout_ref[li],
                      preferred_element_type=jnp.float32) + bout_ref[li]
        act = out.astype(act_ref.dtype)      # feeds the next layer

    act_ref[...] = act                       # carry to the next grid step

    @pl.when(step == pl.num_programs(0) - 1)
    def _():
        o_ref[...] = out.astype(o_ref.dtype)


# ---------------------------------------------------------------------------
# Parameter preparation: fold, slice dead columns, pad lane-dense, stack layers.
# ---------------------------------------------------------------------------
def fold_and_pad_params(layer_params, input_dim, model_dim,
                        param_dtype=jnp.bfloat16):
    D, H = input_dim, model_dim
    Dp, Hp = _round_up(D, 128), _round_up(H, 128)

    wcombs, bcombs, wouts, bouts = [], [], [], []
    for (wfc, bfc, wih, b_ih, b_hh, gamma, beta, wout, bout) in layer_params:
        blstm = b_ih + b_hh
        # live gate columns (i, g, o); forget gate is dead because c0 == 0
        w_blocks, b_blocks = [], []
        for lo, hi in ((0, H), (2 * H, 3 * H), (3 * H, 4 * H)):
            w_blk = wfc @ wih[:, lo:hi]                     # fold fc into gates
            b_blk = bfc @ wih[:, lo:hi] + blstm[lo:hi]
            w_blocks.append(jnp.pad(w_blk, ((0, Dp - D), (0, Hp - H))))
            b_blocks.append(jnp.pad(b_blk, (0, Hp - H)))
        wcombs.append(jnp.concatenate(w_blocks, axis=1))    # (Dp, 3*Hp)
        bcombs.append(jnp.concatenate(b_blocks)[None, :])   # (1, 3*Hp)

        wout_f = gamma[:, None] * wout                      # fold gamma
        bout_f = beta @ wout + bout                         # fold beta
        wouts.append(jnp.pad(wout_f, ((0, Hp - H), (0, Dp - D))))
        bouts.append(jnp.pad(bout_f, (0, Dp - D))[None, :])

    return (jnp.stack(wcombs).astype(param_dtype),   # (L, Dp, 3*Hp)
            jnp.stack(bcombs).astype(jnp.float32),   # (L, 1,  3*Hp)
            jnp.stack(wouts).astype(param_dtype),    # (L, Hp, Dp)
            jnp.stack(bouts).astype(jnp.float32))    # (L, 1,  Dp)


# ---------------------------------------------------------------------------
# Wrapper: single fused pallas_call over all layers, with VMEM budgeting.
# ---------------------------------------------------------------------------
def encoder_rnns_pallas(x, fused_params, input_dim, model_dim):
    wcomb, bcomb, wout, bout = fused_params
    num_layers, Dp, three_hp = wcomb.shape
    Hp = three_hp // 3
    B, D = x.shape
    # bf16 packs 16 rows per packed vreg -> pad batch to 16 for full MXU feed.
    Bp = _round_up(B, 16)

    x_p = jnp.pad(x, ((0, Bp - B), (0, Dp - D)))

    # ---- VMEM budgeting -----------------------------------------------------
    w_item = jnp.dtype(wcomb.dtype).itemsize
    x_item = jnp.dtype(x.dtype).itemsize
    per_layer_w_bytes = (Dp * three_hp + Hp * Dp) * w_item
    per_layer_b_bytes = (three_hp + Dp) * 4
    act_bytes = Bp * Dp * w_item
    io_bytes = 2 * 2 * Bp * Dp * x_item          # x + out, double-buffered

    try:
        vmem_cap = pltpu.get_tpu_info().vmem_capacity_bytes
    except Exception:
        vmem_cap = 64 * 1024 * 1024              # conservative (v7x per-TC)

    budget = int(vmem_cap * 0.7) - act_bytes - io_bytes

    # Largest divisor of num_layers whose double-buffered weight block fits;
    # for small models this collapses the whole stack into grid=(1,), removing
    # per-grid-step overhead; for large models it stays at 1 layer per step.
    layers_per_step = 1
    for lb in range(num_layers, 0, -1):
        if (num_layers % lb == 0 and
                2 * lb * (per_layer_w_bytes + per_layer_b_bytes) <= budget):
            layers_per_step = lb
            break
    num_steps = num_layers // layers_per_step

    step_bytes = (2 * layers_per_step * (per_layer_w_bytes + per_layer_b_bytes)
                  + act_bytes + io_bytes)
    vmem_limit = max(32 * 1024 * 1024, 2 * step_bytes)
    vmem_limit = min(vmem_limit, int(vmem_cap * 0.9))

    # ---- Cost estimate for XLA scheduling ------------------------------------
    flops = 2 * Bp * (Dp * three_hp + Hp * Dp) * num_layers
    transcendentals = Bp * (4 * Hp + 1) * num_layers
    bytes_accessed = (num_layers * (per_layer_w_bytes + per_layer_b_bytes)
                      + 2 * Bp * Dp * x_item)

    kernel = functools.partial(_encoder_rnns_kernel, model_dim=model_dim,
                               layers_per_step=layers_per_step)

    out_p = pl.pallas_call(
        kernel,
        out_shape=jax.ShapeDtypeStruct((Bp, Dp), x.dtype),
        grid_spec=pltpu.PrefetchScalarGridSpec(
            num_scalar_prefetch=0,
            grid=(num_steps,),
            in_specs=[
                # activation input: one resident block, DMA'd once
                pl.BlockSpec((Bp, Dp), lambda s: (0, 0)),
                # per-step weight blocks of `layers_per_step` layers: block
                # index follows the step axis so the pipeline prefetches the
                # next layer block while the current one computes
                pl.BlockSpec((layers_per_step, Dp, 3 * Hp), lambda s: (s, 0, 0)),
                pl.BlockSpec((layers_per_step, 1, 3 * Hp), lambda s: (s, 0, 0)),
                pl.BlockSpec((layers_per_step, Hp, Dp), lambda s: (s, 0, 0)),
                pl.BlockSpec((layers_per_step, 1, Dp), lambda s: (s, 0, 0)),
            ],
            out_specs=pl.BlockSpec((Bp, Dp), lambda s: (0, 0)),
            scratch_shapes=[pltpu.VMEM((Bp, Dp), wcomb.dtype)],
        ),
        # the layer axis is a sequential dependency chain
        compiler_params=pltpu.CompilerParams(
            dimension_semantics=("arbitrary",),
            vmem_limit_bytes=vmem_limit),
        cost_estimate=pl.CostEstimate(flops=flops,
                                      transcendentals=transcendentals,
                                      bytes_accessed=bytes_accessed),
    )(x_p, wcomb, bcomb, wout, bout)

    return out_p[:B, :D]


def encoder_rnns(x, layer_params, input_dim, model_dim,
                 param_dtype=jnp.bfloat16):
    fused = fold_and_pad_params(layer_params, input_dim, model_dim, param_dtype)
    return encoder_rnns_pallas(x, fused, input_dim, model_dim)


# ---------------------------------------------------------------------------
# Parameter init + references.
# ---------------------------------------------------------------------------
def init_layer_params(key, input_dim, model_dim, dtype=jnp.float32):
    """Original (unfolded) EncoderLSTM parameters; matrices stored (in, out)."""
    ks = jax.random.split(key, 9)
    u = lambda k, shape, bound: jax.random.uniform(k, shape, dtype, -bound, bound)
    fc_b = 1.0 / (input_dim ** 0.5)
    lstm_b = 1.0 / (model_dim ** 0.5)
    out_b = 1.0 / (model_dim ** 0.5)

    wfc = u(ks[0], (input_dim, input_dim), fc_b)
    bfc = u(ks[1], (input_dim,), fc_b)
    wih = u(ks[2], (input_dim, 4 * model_dim), lstm_b)      # W_ih^T
    b_ih = u(ks[3], (4 * model_dim,), lstm_b)
    b_hh = u(ks[4], (4 * model_dim,), lstm_b)
    # non-trivial LayerNorm affine so the gamma/beta fold is actually exercised
    gamma = 1.0 + 0.1 * u(ks[5], (model_dim,), 1.0)
    beta = 0.1 * u(ks[6], (model_dim,), 1.0)
    wout = u(ks[7], (model_dim, input_dim), out_b)          # (in, out)
    bout = u(ks[8], (input_dim,), out_b)
    return (wfc, bfc, wih, b_ih, b_hh, gamma, beta, wout, bout)


def reference_layer(x, params):
    """Pure-JAX reference of one EncoderLSTM block, original (unfolded) math."""
    wfc, bfc, wih, b_ih, b_hh, gamma, beta, wout, bout = params
    H = gamma.shape[0]
    prec = lax.Precision.HIGHEST
    h = jnp.dot(x, wfc, precision=prec) + bfc
    gates = jnp.dot(h, wih, precision=prec) + b_ih + b_hh
    i_g = jax.nn.sigmoid(gates[:, 0 * H:1 * H])
    f_g = jax.nn.sigmoid(gates[:, 1 * H:2 * H])      # multiplies c0 == 0
    g_g = jnp.tanh(gates[:, 2 * H:3 * H])
    o_g = jax.nn.sigmoid(gates[:, 3 * H:4 * H])
    c = f_g * 0.0 + i_g * g_g
    hl = o_g * jnp.tanh(c)
    mean = jnp.mean(hl, axis=-1, keepdims=True)
    var = jnp.mean((hl - mean) ** 2, axis=-1, keepdims=True)
    norm = (hl - mean) / jnp.sqrt(var + 1e-5) * gamma + beta
    return jnp.dot(norm, wout, precision=prec) + bout


def reference_fused(x, fused_params, input_dim, model_dim):
    """Plain-JAX replica of the folded/padded kernel math (same dtypes,
    padding and single-pass LayerNorm) — validates the kernel structure."""
    wcomb, bcomb, wout, bout = fused_params
    num_layers, Dp, three_hp = wcomb.shape
    Hp = three_hp // 3
    D = x.shape[1]
    prec = lax.Precision.HIGHEST
    inv_h = 1.0 / model_dim
    act = jnp.pad(x, ((0, 0), (0, Dp - D))).astype(jnp.float32)
    for l in range(num_layers):
        gates = jnp.dot(act.astype(wcomb.dtype), wcomb[l],
                        preferred_element_type=jnp.float32,
                        precision=prec) + bcomb[l]
        i_g = jax.nn.sigmoid(gates[:, 0 * Hp:1 * Hp])
        g_g = jnp.tanh(gates[:, 1 * Hp:2 * Hp])
        o_g = jax.nn.sigmoid(gates[:, 2 * Hp:3 * Hp])
        hl = o_g * jnp.tanh(i_g * g_g)
        mean = jnp.sum(hl, axis=-1, keepdims=True) * inv_h
        var = jnp.sum(hl * hl, axis=-1, keepdims=True) * inv_h - mean * mean
        norm = (hl - mean) * lax.rsqrt(var + 1e-5)
        act = jnp.dot(norm.astype(wout.dtype), wout[l],
                      preferred_element_type=jnp.float32,
                      precision=prec) + bout[l]
    return act[:, :D]


if __name__ == "__main__":
    B, INPUT_DIM, MODEL_DIM, NUM_LAYERS = 8, 16, 32, 2

    key = jax.random.PRNGKey(0)
    k_x, *k_layers = jax.random.split(key, NUM_LAYERS + 1)
    x = jax.random.normal(k_x, (B, INPUT_DIM), jnp.float32)
    layer_params = [init_layer_params(k, INPUT_DIM, MODEL_DIM) for k in k_layers]

    # Original (unfolded) module semantics in f32.
    ref = x
    for p in layer_params:
        ref = reference_layer(ref, p)

    # Check A (algebra): folded / padded / single-pass-LayerNorm math in f32
    # reproduces the original module semantics.
    fused_f32 = fold_and_pad_params(layer_params, INPUT_DIM, MODEL_DIM, jnp.float32)
    folded_f32 = reference_fused(x, fused_f32, INPUT_DIM, MODEL_DIM)
    assert jnp.allclose(folded_f32, ref, atol=1e-3, rtol=1e-3), \
        "folded math diverges from module semantics"

    # Check B (kernel): fused Pallas kernel (bf16 weights, f32 accumulation and
    # element-wise math) matches the same folded math evaluated in plain JAX.
    fused_bf16 = fold_and_pad_params(layer_params, INPUT_DIM, MODEL_DIM, jnp.bfloat16)
    out = encoder_rnns_pallas(x, fused_bf16, INPUT_DIM, MODEL_DIM)
    out = jax.block_until_ready(out)
    assert out.shape == (B, INPUT_DIM)
    folded_bf16 = reference_fused(x, fused_bf16, INPUT_DIM, MODEL_DIM)
    assert jnp.allclose(out, folded_bf16, atol=2e-2, rtol=2e-2), \
        "Pallas kernel diverges from folded reference"

    print("KERNEL_OK")
</pallas_src>

<mosaic_0001>
module attributes {stable_mosaic.version = 11 : i64} {
  func.func @_encoder_rnns_kernel(%arg0: i32, %arg1: memref<16x128xf32, #tpu.memory_space<vmem>>, %arg2: memref<2x128x384xbf16, #tpu.memory_space<vmem>>, %arg3: memref<2x1x384xf32, #tpu.memory_space<vmem>>, %arg4: memref<2x128x128xbf16, #tpu.memory_space<vmem>>, %arg5: memref<2x1x128xf32, #tpu.memory_space<vmem>>, %arg6: memref<16x128xf32, #tpu.memory_space<vmem>>, %arg7: memref<16x128xbf16, #tpu.memory_space<vmem>>) attributes {dimension_semantics = [#tpu.dimension_semantics<arbitrary>], iteration_bounds = array<i64: 1>, scalar_prefetch = 0 : i64, scratch_operands = 1 : i64, tpu.core_type = #tpu.core_type<tc>, window_params = [{pipeline_mode = #tpu.pipeline_mode<synchronous>, transform_indices = @transform_0, window_bounds = array<i64: 16, 128>}, {transform_indices = @transform_1, window_bounds = array<i64: 2, 128, 384>}, {transform_indices = @transform_2, window_bounds = array<i64: 2, 1, 384>}, {transform_indices = @transform_3, window_bounds = array<i64: 2, 128, 128>}, {transform_indices = @transform_4, window_bounds = array<i64: 2, 1, 128>}, {pipeline_mode = #tpu.pipeline_mode<synchronous>, transform_indices = @transform_5, window_bounds = array<i64: 16, 128>}]} {
    %c0_i32 = arith.constant 0 : i32
    %0 = arith.cmpi eq, %arg0, %c0_i32 : i32
    %1 = arith.extui %0 : i1 to i32
    %c0_i32_0 = arith.constant 0 : i32
    %2 = arith.cmpi ne, %1, %c0_i32_0 : i32
    scf.if %2 {
      %c0_46 = arith.constant 0 : index
      %c0_47 = arith.constant 0 : index
      %110 = vector.load %arg1[%c0_46, %c0_47] : memref<16x128xf32, #tpu.memory_space<vmem>>, vector<16x128xf32>
      %111 = arith.truncf %110 : vector<16x128xf32> to vector<16x128xbf16>
      %c0_48 = arith.constant 0 : index
      %c0_49 = arith.constant 0 : index
      %112 = vector.load %arg7[%c0_48, %c0_49] : memref<16x128xbf16, #tpu.memory_space<vmem>>, vector<16x128xbf16>
      tpu.vector_store %arg7[%c0_48, %c0_49], %111 {strides = array<i32>} : memref<16x128xbf16, #tpu.memory_space<vmem>>, vector<16x128xbf16>,
    } else {
    }
    %c0 = arith.constant 0 : index
    %c0_1 = arith.constant 0 : index
    %3 = vector.load %arg7[%c0, %c0_1] : memref<16x128xbf16, #tpu.memory_space<vmem>>, vector<16x128xbf16>
    %c0_2 = arith.constant 0 : index
    %c0_3 = arith.constant 0 : index
    %c0_4 = arith.constant 0 : index
    %4 = vector.load %arg2[%c0_2, %c0_3, %c0_4] : memref<2x128x384xbf16, #tpu.memory_space<vmem>>, vector<1x128x384xbf16>
    %5 = vector.shape_cast %4 : vector<1x128x384xbf16> to vector<128x384xbf16>
    %cst = arith.constant dense<0.000000e+00> : vector<16x384xf32>
    %6 = tpu.matmul %3, %5, %cst {dimension_numbers = #tpu.dot_dimension_numbers<[1], [0], [0], [1], [0, 0, 1, 1], [], []>} : vector<16x128xbf16>, vector<128x384xbf16>, vector<16x384xf32> -> vector<16x384xf32>
    %c0_5 = arith.constant 0 : index
    %c0_6 = arith.constant 0 : index
    %c0_7 = arith.constant 0 : index
    %7 = vector.load %arg3[%c0_5, %c0_6, %c0_7] : memref<2x1x384xf32, #tpu.memory_space<vmem>>, vector<1x1x384xf32>
    %8 = vector.shape_cast %7 : vector<1x1x384xf32> to vector<1x384xf32>
    %9 = vector.broadcast %8 : vector<1x384xf32> to vector<16x384xf32>
    %10 = arith.addf %6, %9 : vector<16x384xf32>
    %11 = vector.extract_strided_slice %10 {offsets = [0, 0], sizes = [16, 128], strides = [1, 1]} : vector<16x384xf32> to vector<16x128xf32>
    %12 = arith.negf %11 : vector<16x128xf32>
    %13 = math.exp %12 : vector<16x128xf32>
    %cst_8 = arith.constant 1.000000e+00 : f32
    %14 = vector.broadcast %cst_8 : f32 to vector<16x128xf32>
    %15 = arith.addf %14, %13 : vector<16x128xf32>
    %16 = arith.divf %14, %15 : vector<16x128xf32>
    %17 = vector.extract_strided_slice %10 {offsets = [0, 128], sizes = [16, 128], strides = [1, 1]} : vector<16x384xf32> to vector<16x128xf32>
    %18 = math.tanh %17 : vector<16x128xf32>
    %19 = vector.extract_strided_slice %10 {offsets = [0, 256], sizes = [16, 128], strides = [1, 1]} : vector<16x384xf32> to vector<16x128xf32>
    %20 = arith.negf %19 : vector<16x128xf32>
    %21 = math.exp %20 : vector<16x128xf32>
    %cst_9 = arith.constant 1.000000e+00 : f32
    %22 = vector.broadcast %cst_9 : f32 to vector<16x128xf32>
    %23 = arith.addf %22, %21 : vector<16x128xf32>
    %24 = arith.divf %22, %23 : vector<16x128xf32>
    %25 = arith.mulf %16, %18 : vector<16x128xf32>
    %26 = math.tanh %25 : vector<16x128xf32>
    %27 = arith.mulf %24, %26 : vector<16x128xf32>
    %cst_10 = arith.constant dense<0.000000e+00> : vector<16xf32>
    %28 = vector.multi_reduction <add>, %27, %cst_10 [1] : vector<16x128xf32> to vector<16xf32>
    %29 = vector.shape_cast %28 : vector<16xf32> to vector<16x1xf32>
    %30 = arith.mulf %27, %27 : vector<16x128xf32>
    %cst_11 = arith.constant dense<0.000000e+00> : vector<16xf32>
    %31 = vector.multi_reduction <add>, %30, %cst_11 [1] : vector<16x128xf32> to vector<16xf32>
    %32 = vector.shape_cast %31 : vector<16xf32> to vector<16x1xf32>
    %cst_12 = arith.constant 3.125000e-02 : f32
    %33 = vector.broadcast %cst_12 : f32 to vector<16x1xf32>
    %34 = arith.mulf %29, %33 : vector<16x1xf32>
    %cst_13 = arith.constant 3.125000e-02 : f32
    %35 = vector.broadcast %cst_13 : f32 to vector<16x1xf32>
    %36 = arith.mulf %32, %35 : vector<16x1xf32>
    %37 = arith.mulf %34, %34 : vector<16x1xf32>
    %38 = arith.subf %36, %37 : vector<16x1xf32>
    %39 = vector.broadcast %34 : vector<16x1xf32> to vector<16x128xf32>
    %40 = arith.subf %27, %39 : vector<16x128xf32>
    %cst_14 = arith.constant 9.99999974E-6 : f32
    %41 = vector.broadcast %cst_14 : f32 to vector<16x1xf32>
    %42 = arith.addf %38, %41 : vector<16x1xf32>
    %43 = math.rsqrt %42 : vector<16x1xf32>
    %44 = vector.broadcast %43 : vector<16x1xf32> to vector<16x128xf32>
    %45 = arith.mulf %40, %44 : vector<16x128xf32>
    %46 = arith.truncf %45 : vector<16x128xf32> to vector<16x128xbf16>
    %c0_15 = arith.constant 0 : index
    %c0_16 = arith.constant 0 : index
    %c0_17 = arith.constant 0 : index
    %47 = vector.load %arg4[%c0_15, %c0_16, %c0_17] : memref<2x128x128xbf16, #tpu.memory_space<vmem>>, vector<1x128x128xbf16>
    %48 = vector.shape_cast %47 : vector<1x128x128xbf16> to vector<128x128xbf16>
    %cst_18 = arith.constant dense<0.000000e+00> : vector<16x128xf32>
    %49 = tpu.matmul %46, %48, %cst_18 {dimension_numbers = #tpu.dot_dimension_numbers<[1], [0], [0], [1], [0, 0, 1, 1], [], []>} : vector<16x128xbf16>, vector<128x128xbf16>, vector<16x128xf32> -> vector<16x128xf32>
    %c0_19 = arith.constant 0 : index
    %c0_20 = arith.constant 0 : index
    %c0_21 = arith.constant 0 : index
    %50 = vector.load %arg5[%c0_19, %c0_20, %c0_21] : memref<2x1x128xf32, #tpu.memory_space<vmem>>, vector<1x1x128xf32>
    %51 = vector.shape_cast %50 : vector<1x1x128xf32> to vector<1x128xf32>
    %52 = vector.broadcast %51 : vector<1x128xf32> to vector<16x128xf32>
    %53 = arith.addf %49, %52 : vector<16x128xf32>
    %54 = arith.truncf %53 : vector<16x128xf32> to vector<16x128xbf16>
    %c1 = arith.constant 1 : index
    %c0_22 = arith.constant 0 : index
    %c0_23 = arith.constant 0 : index
    %55 = vector.load %arg2[%c1, %c0_22, %c0_23] : memref<2x128x384xbf16, #tpu.memory_space<vmem>>, vector<1x128x384xbf16>
    %56 = vector.shape_cast %55 : vector<1x128x384xbf16> to vector<128x384xbf16>
    %cst_24 = arith.constant dense<0.000000e+00> : vector<16x384xf32>
    %57 = tpu.matmul %54, %56, %cst_24 {dimension_numbers = #tpu.dot_dimension_numbers<[1], [0], [0], [1], [0, 0, 1, 1], [], []>} : vector<16x128xbf16>, vector<128x384xbf16>, vector<16x384xf32> -> vector<16x384xf32>
    %c1_25 = arith.constant 1 : index
    %c0_26 = arith.constant 0 : index
    %c0_27 = arith.constant 0 : index
    %58 = vector.load %arg3[%c1_25, %c0_26, %c0_27] : memref<2x1x384xf32, #tpu.memory_space<vmem>>, vector<1x1x384xf32>
    %59 = vector.shape_cast %58 : vector<1x1x384xf32> to vector<1x384xf32>
    %60 = vector.broadcast %59 : vector<1x384xf32> to vector<16x384xf32>
    %61 = arith.addf %57, %60 : vector<16x384xf32>
    %62 = vector.extract_strided_slice %61 {offsets = [0, 0], sizes = [16, 128], strides = [1, 1]} : vector<16x384xf32> to vector<16x128xf32>
    %63 = arith.negf %62 : vector<16x128xf32>
    %64 = math.exp %63 : vector<16x128xf32>
    %cst_28 = arith.constant 1.000000e+00 : f32
    %65 = vector.broadcast %cst_28 : f32 to vector<16x128xf32>
    %66 = arith.addf %65, %64 : vector<16x128xf32>
    %67 = arith.divf %65, %66 : vector<16x128xf32>
    %68 = vector.extract_strided_slice %61 {offsets = [0, 128], sizes = [16, 128], strides = [1, 1]} : vector<16x384xf32> to vector<16x128xf32>
    %69 = math.tanh %68 : vector<16x128xf32>
    %70 = vector.extract_strided_slice %61 {offsets = [0, 256], sizes = [16, 128], strides = [1, 1]} : vector<16x384xf32> to vector<16x128xf32>
    %71 = arith.negf %70 : vector<16x128xf32>
    %72 = math.exp %71 : vector<16x128xf32>
    %cst_29 = arith.constant 1.000000e+00 : f32
    %73 = vector.broadcast %cst_29 : f32 to vector<16x128xf32>
    %74 = arith.addf %73, %72 : vector<16x128xf32>
    %75 = arith.divf %73, %74 : vector<16x128xf32>
    %76 = arith.mulf %67, %69 : vector<16x128xf32>
    %77 = math.tanh %76 : vector<16x128xf32>
    %78 = arith.mulf %75, %77 : vector<16x128xf32>
    %cst_30 = arith.constant dense<0.000000e+00> : vector<16xf32>
    %79 = vector.multi_reduction <add>, %78, %cst_30 [1] : vector<16x128xf32> to vector<16xf32>
    %80 = vector.shape_cast %79 : vector<16xf32> to vector<16x1xf32>
    %81 = arith.mulf %78, %78 : vector<16x128xf32>
    %cst_31 = arith.constant dense<0.000000e+00> : vector<16xf32>
    %82 = vector.multi_reduction <add>, %81, %cst_31 [1] : vector<16x128xf32> to vector<16xf32>
    %83 = vector.shape_cast %82 : vector<16xf32> to vector<16x1xf32>
    %cst_32 = arith.constant 3.125000e-02 : f32
    %84 = vector.broadcast %cst_32 : f32 to vector<16x1xf32>
    %85 = arith.mulf %80, %84 : vector<16x1xf32>
    %cst_33 = arith.constant 3.125000e-02 : f32
    %86 = vector.broadcast %cst_33 : f32 to vector<16x1xf32>
    %87 = arith.mulf %83, %86 : vector<16x1xf32>
    %88 = arith.mulf %85, %85 : vector<16x1xf32>
    %89 = arith.subf %87, %88 : vector<16x1xf32>
    %90 = vector.broadcast %85 : vector<16x1xf32> to vector<16x128xf32>
    %91 = arith.subf %78, %90 : vector<16x128xf32>
    %cst_34 = arith.constant 9.99999974E-6 : f32
    %92 = vector.broadcast %cst_34 : f32 to vector<16x1xf32>
    %93 = arith.addf %89, %92 : vector<16x1xf32>
    %94 = math.rsqrt %93 : vector<16x1xf32>
    %95 = vector.broadcast %94 : vector<16x1xf32> to vector<16x128xf32>
    %96 = arith.mulf %91, %95 : vector<16x128xf32>
    %97 = arith.truncf %96 : vector<16x128xf32> to vector<16x128xbf16>
    %c1_35 = arith.constant 1 : index
    %c0_36 = arith.constant 0 : index
    %c0_37 = arith.constant 0 : index
    %98 = vector.load %arg4[%c1_35, %c0_36, %c0_37] : memref<2x128x128xbf16, #tpu.memory_space<vmem>>, vector<1x128x128xbf16>
    %99 = vector.shape_cast %98 : vector<1x128x128xbf16> to vector<128x128xbf16>
    %cst_38 = arith.constant dense<0.000000e+00> : vector<16x128xf32>
    %100 = tpu.matmul %97, %99, %cst_38 {dimension_numbers = #tpu.dot_dimension_numbers<[1], [0], [0], [1], [0, 0, 1, 1], [], []>} : vector<16x128xbf16>, vector<128x128xbf16>, vector<16x128xf32> -> vector<16x128xf32>
    %c1_39 = arith.constant 1 : index
    %c0_40 = arith.constant 0 : index
    %c0_41 = arith.constant 0 : index
    %101 = vector.load %arg5[%c1_39, %c0_40, %c0_41] : memref<2x1x128xf32, #tpu.memory_space<vmem>>, vector<1x1x128xf32>
    %102 = vector.shape_cast %101 : vector<1x1x128xf32> to vector<1x128xf32>
    %103 = vector.broadcast %102 : vector<1x128xf32> to vector<16x128xf32>
    %104 = arith.addf %100, %103 : vector<16x128xf32>
    %105 = arith.truncf %104 : vector<16x128xf32> to vector<16x128xbf16>
    %c0_42 = arith.constant 0 : index
    %c0_43 = arith.constant 0 : index
    %106 = vector.load %arg7[%c0_42, %c0_43] : memref<16x128xbf16, #tpu.memory_space<vmem>>, vector<16x128xbf16>
    tpu.vector_store %arg7[%c0_42, %c0_43], %105 {strides = array<i32>} : memref<16x128xbf16, #tpu.memory_space<vmem>>, vector<16x128xbf16>,
    %c0_i32_44 = arith.constant 0 : i32
    %107 = arith.cmpi eq, %arg0, %c0_i32_44 : i32
    %108 = arith.extui %107 : i1 to i32
    %c0_i32_45 = arith.constant 0 : i32
    %109 = arith.cmpi ne, %108, %c0_i32_45 : i32
    scf.if %109 {
      %c0_46 = arith.constant 0 : index
      %c0_47 = arith.constant 0 : index
      %110 = vector.load %arg6[%c0_46, %c0_47] : memref<16x128xf32, #tpu.memory_space<vmem>>, vector<16x128xf32>
      tpu.vector_store %arg6[%c0_46, %c0_47], %104 {strides = array<i32>} : memref<16x128xf32, #tpu.memory_space<vmem>>, vector<16x128xf32>,
    } else {
    }
    return
  }
  func.func @transform_0(%arg0: i32) -> (i32, i32) {
    %c0_i32 = arith.constant 0 : i32
    %c0_i32_0 = arith.constant 0 : i32
    %c0_i32_1 = arith.constant 0 : i32
    return %c0_i32, %c0_i32_0 : i32, i32
  }
  func.func @transform_1(%arg0: i32) -> (i32, i32, i32) {
    %c0_i32 = arith.constant 0 : i32
    %c0_i32_0 = arith.constant 0 : i32
    %c0_i32_1 = arith.constant 0 : i32
    return %arg0, %c0_i32, %c0_i32_0 : i32, i32, i32
  }
  func.func @transform_2(%arg0: i32) -> (i32, i32, i32) {
    %c0_i32 = arith.constant 0 : i32
    %c0_i32_0 = arith.constant 0 : i32
    %c0_i32_1 = arith.constant 0 : i32
    return %arg0, %c0_i32, %c0_i32_0 : i32, i32, i32
  }
  func.func @transform_3(%arg0: i32) -> (i32, i32, i32) {
    %c0_i32 = arith.constant 0 : i32
    %c0_i32_0 = arith.constant 0 : i32
    %c0_i32_1 = arith.constant 0 : i32
    return %arg0, %c0_i32, %c0_i32_0 : i32, i32, i32
  }
  func.func @transform_4(%arg0: i32) -> (i32, i32, i32) {
    %c0_i32 = arith.constant 0 : i32
    %c0_i32_0 = arith.constant 0 : i32
    %c0_i32_1 = arith.constant 0 : i32
    return %arg0, %c0_i32, %c0_i32_0 : i32, i32, i32
  }
  func.func @transform_5(%arg0: i32) -> (i32, i32) {
    %c0_i32 = arith.constant 0 : i32
    %c0_i32_0 = arith.constant 0 : i32
    %c0_i32_1 = arith.constant 0 : i32
    return %c0_i32, %c0_i32_0 : i32, i32
  }
}

</mosaic_0001>

<llo_original>
// kernel: tpu_custom_call.1
$region0: #{tpu_custom_call.1}
  #allocation0 [shape = 'u32[]', space=smem, size = 0x4, offset = 0x4, fixed_abs, tag = 'smem constant byte address 0x4 - core index']
  #allocation1 [shape = 'u32[144,128]{1,0:T(1,128)}', space=vmem, size = 0x12000, scoped, tag = 'internal scratch']
  #allocation2 [shape = 'bf16[16,128]{1,0:T(16,128)(2,1)}', space=vmem, size = 0x1000, scoped, tag = 'scratch operand']
  %s0 = inlined_call_operand.hbm [shape: f32[16,128], index: 0, kind: input, shape index: {}]
  %s1 = inlined_call_operand.hbm [shape: bf16[2,128,384], index: 1, kind: input, shape index: {}]
  %s2 = inlined_call_operand.vmem [shape: f32[2,1,384], index: 2, kind: input, shape index: {}]
  %s3 = inlined_call_operand.hbm [shape: bf16[2,128,128], index: 3, kind: input, shape index: {}]
  %s4 = inlined_call_operand.vmem [shape: f32[2,1,128], index: 4, kind: input, shape index: {}]
  %s5 = inlined_call_operand.hbm [shape: f32[16,128], index: 5, kind: output, shape index: {}]
  %s6 = sld [smem:[#allocation0]]
  $region50: #{tpu_custom_call.1} parent=0
    _
  %s8 = ssub.s32 1, %s6
  %s9 = scalar_select 0, %s8, %s6
  $region1: #{tpu_custom_call.1} parent=0
    #allocation3 [shape = 'u8[8192]{0}', space=vmem, size = 0x2000, scoped, tag = 'input window, operand 0, single buffered']
    #allocation4 [shape = 's32[1]{0}', space=sflag, size = 0x4, scoped, tag = 'scoped memory for tpu_custom_call.1']
    #allocation5 [shape = 's32[1]{0}', space=sflag, size = 0x4, scoped, tag = 'scoped memory for tpu_custom_call.1']
    #allocation6 [shape = 'u8[196608]{0}', space=vmem, size = 0x30000, scoped, tag = 'input window, operand 1, single buffered']
    #allocation7 [shape = 's32[1]{0}', space=sflag, size = 0x4, scoped, tag = 'scoped memory for tpu_custom_call.1']
    #allocation8 [shape = 'u8[65536]{0}', space=vmem, size = 0x10000, scoped, tag = 'input window, operand 3, single buffered']
    #allocation9 [shape = 'u8[8192]{0}', space=vmem, size = 0x2000, scoped, tag = 'output window, operand 0, single buffered']
    %10 = vsyncpa [#allocation4], 0
    %11 = vsyncpa [#allocation7], 0
    %12 = vsyncpa [#allocation5], 0
    // Predicated region
    $region2: #{tpu_custom_call.1} parent=1 // pred_check
      _
    $region3: #{tpu_custom_call.1} parent=1 // pred_check_branch
      %14 = sbr.rel (0) target = $region5
    $region4: #{tpu_custom_call.1} parent=1 // pred_region
      %s16 = ssub.s32 256, 256
      %17 = vsyncadd [#allocation4], %s16
      %s18 = sshll.u32 [#allocation3], 4
      %s19 = int_to_ptr.vmem [resolvable:$true] %s18
      %24 = dma.hbm_to_vmem [thread:$0]  %s0, 256, %s19, [#allocation4], 128, 128, 8
    $region5: #{tpu_custom_call.1} parent=1 // pred_fallthru
      _
    // Predicated region
    $region6: #{tpu_custom_call.1} parent=1 // pred_check
      _
    $region7: #{tpu_custom_call.1} parent=1 // pred_check_branch
      %26 = sbr.rel (0) target = $region9
    $region8: #{tpu_custom_call.1} parent=1 // pred_region
      %s28 = ssub.s32 6144, 6144
      %29 = vsyncadd [#allocation7], %s28
      %s30 = sshll.u32 [#allocation6], 4
      %s31 = int_to_ptr.vmem [resolvable:$true] %s30
      %36 = dma.hbm_to_vmem [thread:$0]  %s1, 6144, %s31, [#allocation7], 192, 192, 12
    $region9: #{tpu_custom_call.1} parent=1 // pred_fallthru
      _
    // Predicated region
    $region10: #{tpu_custom_call.1} parent=1 // pred_check
      _
    $region11: #{tpu_custom_call.1} parent=1 // pred_check_branch
      %38 = sbr.rel (0) target = $region13
    $region12: #{tpu_custom_call.1} parent=1 // pred_region
      _
    $region13: #{tpu_custom_call.1} parent=1 // pred_fallthru
      _
    // Predicated region
    $region14: #{tpu_custom_call.1} parent=1 // pred_check
      _
    $region15: #{tpu_custom_call.1} parent=1 // pred_check_branch
      %40 = sbr.rel (0) target = $region17
    $region16: #{tpu_custom_call.1} parent=1 // pred_region
      %s42 = ssub.s32 2048, 2048
      %43 = vsyncadd [#allocation7], %s42
      %s44 = sshll.u32 [#allocation8], 4
      %s45 = int_to_ptr.vmem [resolvable:$true] %s44
      %50 = dma.hbm_to_vmem [thread:$0]  %s3, 2048, %s45, [#allocation7], 64, 64, 4
    $region17: #{tpu_custom_call.1} parent=1 // pred_fallthru
      _
    // Predicated region
    $region18: #{tpu_custom_call.1} parent=1 // pred_check
      _
    $region19: #{tpu_custom_call.1} parent=1 // pred_check_branch
      %52 = sbr.rel (0) target = $region21
    $region20: #{tpu_custom_call.1} parent=1 // pred_region
      _
    $region21: #{tpu_custom_call.1} parent=1 // pred_fallthru
      _
    // Predicated region
    $region22: #{tpu_custom_call.1} parent=1 // pred_check
      _
    $region23: #{tpu_custom_call.1} parent=1 // pred_check_branch
      %54 = sbr.rel (0) target = $region25
    $region24: #{tpu_custom_call.1} parent=1 // pred_region
      %55 = dma.done [#allocation4], 256
    $region25: #{tpu_custom_call.1} parent=1 // pred_fallthru
      _
    // Predicated region
    $region26: #{tpu_custom_call.1} parent=1 // pred_check
      _
    $region27: #{tpu_custom_call.1} parent=1 // pred_check_branch
      %57 = sbr.rel (0) target = $region29
    $region28: #{tpu_custom_call.1} parent=1 // pred_region
      %58 = dma.done [#allocation7], 6144
    $region29: #{tpu_custom_call.1} parent=1 // pred_fallthru
      _
    // Predicated region
    $region30: #{tpu_custom_call.1} parent=1 // pred_check
      _
    $region31: #{tpu_custom_call.1} parent=1 // pred_check_branch
      %60 = sbr.rel (0) target = $region33
    $region32: #{tpu_custom_call.1} parent=1 // pred_region
      %61 = dma.done [#allocation7], 2048
    $region33: #{tpu_custom_call.1} parent=1 // pred_fallthru
      _
    %p63 = scmp.eq.s32.totalorder 0, 0
    // Predicated region
    $region34: #{tpu_custom_call.1} parent=1 // pred_check
      %p64 = pneg %p63
    $region35: #{tpu_custom_call.1} parent=1 // pred_check_branch
      %66 = sbr.rel (%p64) target = $region37
    $region36: #{tpu_custom_call.1} parent=1 // pred_region
      %v67 = vld [vmem:[#allocation3] sm:$0xff]
      %v68 = vld [vmem:[#allocation3 + $0x8] sm:$0xff]
      %v69 = vpack.c.bf16 %v68, %v67
      %70 = vst [vmem:[#allocation2] sm:$0xff] %v69
    $region37: #{tpu_custom_call.1} parent=1 // pred_fallthru
      _
    %v71 = vld [vmem:[#allocation2] sm:$0xff]
    %v72 = vld [vmem:[#allocation6] sm:$0xff]
    %v73 = vld [vmem:[#allocation6 + $0x8] sm:$0xf]
    %v74 = vld [vmem:[#allocation6 + $0xc] sm:$0xff]
    %v75 = vld [vmem:[#allocation6 + $0x14] sm:$0xf]
    %v76 = vld [vmem:[#allocation6 + $0x18] sm:$0xff]
    %v77 = vld [vmem:[#allocation6 + $0x20] sm:$0xf]
    %v78 = vld [vmem:[#allocation6 + $0x24] sm:$0xff]
    %v79 = vld [vmem:[#allocation6 + $0x2c] sm:$0xf]
    %v80 = vld [vmem:[#allocation6 + $0x30] sm:$0xff]
    %v81 = vld [vmem:[#allocation6 + $0x38] sm:$0xf]
    %v82 = vld [vmem:[#allocation6 + $0x3c] sm:$0xff]
    %v83 = vld [vmem:[#allocation6 + $0x44] sm:$0xf]
    %v84 = vld [vmem:[#allocation6 + $0x48] sm:$0xff]
    %v85 = vld [vmem:[#allocation6 + $0x50] sm:$0xf]
    %v86 = vld [vmem:[#allocation6 + $0x54] sm:$0xff]
    %v87 = vld [vmem:[#allocation6 + $0x5c] sm:$0xf]
    %v88 = vld [vmem:[#allocation6 + $0x60] sm:$0xff]
    %v89 = vld [vmem:[#allocation6 + $0x68] sm:$0xf]
    %v90 = vld [vmem:[#allocation6 + $0x6c] sm:$0xff]
    %v91 = vld [vmem:[#allocation6 + $0x74] sm:$0xf]
    %v92 = vld [vmem:[#allocation6 + $0x78] sm:$0xff]
    %v93 = vld [vmem:[#allocation6 + $0x80] sm:$0xf]
    %v94 = vld [vmem:[#allocation6 + $0x84] sm:$0xff]
    %v95 = vld [vmem:[#allocation6 + $0x8c] sm:$0xf]
    %v96 = vld [vmem:[#allocation6 + $0x90] sm:$0xff]
    %v97 = vld [vmem:[#allocation6 + $0x98] sm:$0xf]
    %v98 = vld [vmem:[#allocation6 + $0x9c] sm:$0xff]
    %v99 = vld [vmem:[#allocation6 + $0xa4] sm:$0xf]
    %v100 = vld [vmem:[#allocation6 + $0xa8] sm:$0xff]
    %v101 = vld [vmem:[#allocation6 + $0xb0] sm:$0xf]
    %v102 = vld [vmem:[#allocation6 + $0xb4] sm:$0xff]
    %v103 = vld [vmem:[#allocation6 + $0xbc] sm:$0xf]
    %v104 = vld [vmem:[%s2] sm:$0x7]
    %v106 = vlaneseq
    %v107 = vshrl.u32 %v106, 7
    %v108 = vsub.s32 0, %v107
    %v109 = vrot.slane %v104, %v108
    %v110 = vlaneseq
    %v111 = vshrl.u32 %v110, 7
    %v112 = vsub.s32 1, %v111
    %v113 = vrot.slane %v104, %v112
    %v114 = vlaneseq
    %v115 = vshrl.u32 %v114, 7
    %v116 = vsub.s32 2, %v115
    %v117 = vrot.slane %v104, %v116
    %v153 = vunpack.c.l.b16 %v72
    %v154 = vunpack.c.h.b16 %v72
    %v155 = vunpack.c.l.b16 %v73
    %v156 = vunpack.c.l.b16 %v74
    %v157 = vunpack.c.h.b16 %v74
    %v158 = vunpack.c.l.b16 %v75
    %v159 = vunpack.c.l.b16 %v76
    %v160 = vunpack.c.h.b16 %v76
    %v161 = vunpack.c.l.b16 %v77
    %v162 = vunpack.c.l.b16 %v78
    %v163 = vunpack.c.h.b16 %v78
    %v164 = vunpack.c.l.b16 %v79
    %v165 = vunpack.c.l.b16 %v80
    %v166 = vunpack.c.h.b16 %v80
    %v167 = vunpack.c.l.b16 %v81
    %v168 = vunpack.c.l.b16 %v82
    %v169 = vunpack.c.h.b16 %v82
    %v170 = vunpack.c.l.b16 %v83
    %v171 = vunpack.c.l.b16 %v84
    %v172 = vunpack.c.h.b16 %v84
    %v173 = vunpack.c.l.b16 %v85
    %v174 = vunpack.c.l.b16 %v86
    %v175 = vunpack.c.h.b16 %v86
    %v176 = vunpack.c.l.b16 %v87
    %v177 = vunpack.c.l.b16 %v88
    %v178 = vunpack.c.h.b16 %v88
    %v179 = vunpack.c.l.b16 %v89
    %v180 = vunpack.c.l.b16 %v90
    %v181 = vunpack.c.h.b16 %v90
    %v182 = vunpack.c.l.b16 %v91
    %v183 = vunpack.c.l.b16 %v92
    %v184 = vunpack.c.h.b16 %v92
    %v185 = vunpack.c.l.b16 %v93
    %v186 = vunpack.c.l.b16 %v94
    %v187 = vunpack.c.h.b16 %v94
    %v188 = vunpack.c.l.b16 %v95
    %v189 = vunpack.c.l.b16 %v96
    %v190 = vunpack.c.h.b16 %v96
    %v191 = vunpack.c.l.b16 %v97
    %v192 = vunpack.c.l.b16 %v98
    %v193 = vunpack.c.h.b16 %v98
    %v194 = vunpack.c.l.b16 %v99
    %v195 = vunpack.c.l.b16 %v100
    %v196 = vunpack.c.h.b16 %v100
    %v197 = vunpack.c.l.b16 %v101
    %v198 = vunpack.c.l.b16 %v102
    %v199 = vunpack.c.h.b16 %v102
    %v200 = vunpack.c.l.b16 %v103
    %v201 = vpack.c.b16 %v156, %v153
    %v202 = vpack.c.b16 %v157, %v154
    %v203 = vpack.c.b16 %v158, %v155
    %v204 = vpack.c.b16 %v162, %v159
    %v205 = vpack.c.b16 %v163, %v160
    %v206 = vpack.c.b16 %v164, %v161
    %v207 = vpack.c.b16 %v168, %v165
    %v208 = vpack.c.b16 %v169, %v166
    %v209 = vpack.c.b16 %v170, %v167
    %v210 = vpack.c.b16 %v174, %v171
    %v211 = vpack.c.b16 %v175, %v172
    %v212 = vpack.c.b16 %v176, %v173
    %v213 = vpack.c.b16 %v180, %v177
    %v214 = vpack.c.b16 %v181, %v178
    %v215 = vpack.c.b16 %v182, %v179
    %v216 = vpack.c.b16 %v186, %v183
    %v217 = vpack.c.b16 %v187, %v184
    %v218 = vpack.c.b16 %v188, %v185
    %v219 = vpack.c.b16 %v192, %v189
    %v220 = vpack.c.b16 %v193, %v190
    %v221 = vpack.c.b16 %v194, %v191
    %v222 = vpack.c.b16 %v198, %v195
    %v223 = vpack.c.b16 %v199, %v196
    %v224 = vpack.c.b16 %v200, %v197
    %249 = vmatprep.subr.bf16.mxu0 %v202
    %250 = vmatpush1.bf16.msra.mxu0 %v201
    %251 = vmatprep.subr.bf16.mxu0 %v205
    %252 = vmatpush1.bf16.msra.mxu0 %v204
    %253 = vmatprep.subr.bf16.mxu0 %v208
    %254 = vmatpush1.bf16.msra.mxu0 %v207
    %255 = vmatprep.subr.bf16.mxu0 %v211
    %256 = vmatpush1.bf16.msra.mxu0 %v210
    %257 = vmatprep.subr.bf16.mxu0 %v214
    %258 = vmatpush1.bf16.msra.mxu0 %v213
    %259 = vmatprep.subr.bf16.mxu0 %v217
    %260 = vmatpush1.bf16.msra.mxu0 %v216
    %261 = vmatprep.subr.bf16.mxu0 %v220
    %262 = vmatpush1.bf16.msra.mxu0 %v219
    %263 = vmatprep.subr.bf16.mxu0 %v223
    %264 = vmatpush1.bf16.msra.mxu0 %v222
    %265 = vmatprep.subr.bf16.mxu0 0
    %266 = vmatpush1.bf16.msra.mxu0 0
    %267 = vmatprep.subr.bf16.mxu0 0
    %268 = vmatpush1.bf16.msra.mxu0 0
    %269 = vmatprep.subr.bf16.mxu0 0
    %270 = vmatpush1.bf16.msra.mxu0 0
    %271 = vmatprep.subr.bf16.mxu0 0
    %272 = vmatpush1.bf16.msra.mxu0 0
    %273 = vmatprep.subr.bf16.mxu0 0
    %274 = vmatpush1.bf16.msra.mxu0 0
    %275 = vmatprep.subr.bf16.mxu0 0
    %276 = vmatpush1.bf16.msra.mxu0 0
    %277 = vmatprep.subr.bf16.mxu0 0
    %278 = vmatpush1.bf16.msra.mxu0 0
    %279 = vmatprep.subr.bf16.mxu0 0
    %280 = vmatpush1.bf16.msra.mxu0 0
    %281 = vmatprep.mubr.bf16.mxu0 0
    %282 = vmatmul.mubr.bf16.gmra.mrb[0].mxu0 %v71
    %v283 = vpop.f32.mrb[0].mxu0
    %v284 = vadd.f32 %v109, %v283
    %v285 = vpop.f32.mrb[0].mxu0
    %v286 = vadd.f32 %v113, %v285
    %v287 = vpop.f32.mrb[0].mxu0
    %v288 = vadd.f32 %v109, %v287
    %v289 = vpop.f32.mrb[0].mxu0
    %v290 = vadd.f32 %v113, %v289
    %291 = vdwg.mxu0
    %292 = vmatprep.subr.bf16.mxu0 0
    %293 = vmatpush1.bf16.msra.mxu0 %v203
    %294 = vmatprep.subr.bf16.mxu0 0
    %295 = vmatpush1.bf16.msra.mxu0 %v206
    %296 = vmatprep.subr.bf16.mxu0 0
    %297 = vmatpush1.bf16.msra.mxu0 %v209
    %298 = vmatprep.subr.bf16.mxu0 0
    %299 = vmatpush1.bf16.msra.mxu0 %v212
    %300 = vmatprep.subr.bf16.mxu0 0
    %301 = vmatpush1.bf16.msra.mxu0 %v215
    %302 = vmatprep.subr.bf16.mxu0 0
    %303 = vmatpush1.bf16.msra.mxu0 %v218
    %304 = vmatprep.subr.bf16.mxu0 0
    %305 = vmatpush1.bf16.msra.mxu0 %v221
    %306 = vmatprep.subr.bf16.mxu0 0
    %307 = vmatpush1.bf16.msra.mxu0 %v224
    %308 = vmatprep.subr.bf16.mxu0 0
    %309 = vmatpush1.bf16.msra.mxu0 0
    %310 = vmatprep.subr.bf16.mxu0 0
    %311 = vmatpush1.bf16.msra.mxu0 0
    %312 = vmatprep.subr.bf16.mxu0 0
    %313 = vmatpush1.bf16.msra.mxu0 0
    %314 = vmatprep.subr.bf16.mxu0 0
    %315 = vmatpush1.bf16.msra.mxu0 0
    %316 = vmatprep.subr.bf16.mxu0 0
    %317 = vmatpush1.bf16.msra.mxu0 0
    %318 = vmatprep.subr.bf16.mxu0 0
    %319 = vmatpush1.bf16.msra.mxu0 0
    %320 = vmatprep.subr.bf16.mxu0 0
    %321 = vmatpush1.bf16.msra.mxu0 0
    %322 = vmatprep.subr.bf16.mxu0 0
    %323 = vmatpush1.bf16.msra.mxu0 0
    %324 = vmatprep.mubr.bf16.mxu0 0
    %325 = vmatmul.mubr.bf16.gmra.mrb[0].mxu0 %v71
    %v326 = vpop.f32.mrb[0].mxu0
    %v327 = vadd.f32 %v117, %v326
    %v328 = vpop.f32.mrb[0].mxu0
    %v329 = vpop.f32.mrb[0].mxu0
    %v330 = vadd.f32 %v117, %v329
    %v331 = vpop.f32.mrb[0].mxu0
    %332 = vdwg.mxu0
    %v333 = vxor.u32 %v284, 2147483648
    %v334 = vxor.u32 %v288, 2147483648
    %v335 = vmul.f32 %v333, 1.442695
    %v336 = vpow.pop %v335
    %v337 = vmul.f32 %v334, 1.442695
    %v338 = vpow.pop %v337
    %v339 = vadd.f32 %v336, 1.0
    %v340 = vadd.f32 %v338, 1.0
    %v341 = vrcp.pop %v339
    %v342 = vmul.f32 1.0, %v341
    %v343 = vrcp.pop %v340
    %v344 = vmul.f32 1.0, %v343
    %v345 = vtanh.pop %v286
    %v346 = vtanh.pop %v290
    %v347 = vxor.u32 %v327, 2147483648
    %v348 = vxor.u32 %v330, 2147483648
    %v349 = vmul.f32 %v347, 1.442695
    %v350 = vpow.pop %v349
    %v351 = vmul.f32 %v348, 1.442695
    %v352 = vpow.pop %v351
    %v353 = vadd.f32 %v350, 1.0
    %v354 = vadd.f32 %v352, 1.0
    %v355 = vrcp.pop %v353
    %v356 = vmul.f32 1.0, %v355
    %v357 = vrcp.pop %v354
    %v358 = vmul.f32 1.0, %v357
    %v359 = vmul.f32 %v342, %v345
    %v360 = vmul.f32 %v344, %v346
    %v361 = vtanh.pop %v359
    %v362 = vtanh.pop %v360
    %v363 = vmul.f32 %v356, %v361
    %v364 = vmul.f32 %v358, %v362
    %365 = vadd.xlane.f32.xlu0 %v363
    %v366 = vpop.xlane.xlu0 %365
    %367 = vadd.xlane.f32.xlu0 %v364
    %v368 = vpop.xlane.xlu0 %367
    %v369 = vmul.f32 %v363, %v363
    %v370 = vmul.f32 %v364, %v364
    %371 = vadd.xlane.f32.xlu0 %v369
    %v372 = vpop.xlane.xlu0 %371
    %373 = vadd.xlane.f32.xlu0 %v370
    %v374 = vpop.xlane.xlu0 %373
    %v375 = vmul.f32 %v366, 0.03125
    %v376 = vmul.f32 %v368, 0.03125
    %v377 = vmul.f32 %v372, 0.03125
    %v378 = vmul.f32 %v374, 0.03125
    %v379 = vmul.f32 %v375, %v375
    %v380 = vmul.f32 %v376, %v376
    %v381 = vsub.f32 %v377, %v379
    %v382 = vsub.f32 %v378, %v380
    %v383 = vsub.f32 %v363, %v375
    %v384 = vsub.f32 %v364, %v376
    %v385 = vadd.f32 %v381, 1e-05
    %v386 = vadd.f32 %v382, 1e-05
    %v387 = vrsqrt.pop %v385
    %v388 = vrsqrt.pop %v386
    %v389 = vmul.f32 %v383, %v387
    %v390 = vmul.f32 %v384, %v388
    %v391 = vpack.c.bf16 %v390, %v389
    %v392 = vld [vmem:[#allocation8] sm:$0xf]
    %v393 = vld [vmem:[#allocation8 + $0x4] sm:$0xf]
    %v394 = vld [vmem:[#allocation8 + $0x8] sm:$0xf]
    %v395 = vld [vmem:[#allocation8 + $0xc] sm:$0xf]
    %v396 = vld [vmem:[#allocation8 + $0x10] sm:$0xf]
    %v397 = vld [vmem:[#allocation8 + $0x14] sm:$0xf]
    %v398 = vld [vmem:[#allocation8 + $0x18] sm:$0xf]
    %v399 = vld [vmem:[#allocation8 + $0x1c] sm:$0xf]
    %v400 = vld [vmem:[#allocation8 + $0x20] sm:$0xf]
    %v401 = vld [vmem:[#allocation8 + $0x24] sm:$0xf]
    %v402 = vld [vmem:[#allocation8 + $0x28] sm:$0xf]
    %v403 = vld [vmem:[#allocation8 + $0x2c] sm:$0xf]
    %v404 = vld [vmem:[#allocation8 + $0x30] sm:$0xf]
    %v405 = vld [vmem:[#allocation8 + $0x34] sm:$0xf]
    %v406 = vld [vmem:[#allocation8 + $0x38] sm:$0xf]
    %v407 = vld [vmem:[#allocation8 + $0x3c] sm:$0xf]
    %v408 = vld [vmem:[%s4] sm:$0x1]
    %v410 = vlaneseq
    %v411 = vshrl.u32 %v410, 7
    %v412 = vsub.s32 0, %v411
    %v413 = vrot.slane %v408, %v412
    %v431 = vunpack.c.l.b16 %v392
    %v432 = vunpack.c.l.b16 %v393
    %v433 = vunpack.c.l.b16 %v394
    %v434 = vunpack.c.l.b16 %v395
    %v435 = vunpack.c.l.b16 %v396
    %v436 = vunpack.c.l.b16 %v397
    %v437 = vunpack.c.l.b16 %v398
    %v438 = vunpack.c.l.b16 %v399
    %v439 = vunpack.c.l.b16 %v400
    %v440 = vunpack.c.l.b16 %v401
    %v441 = vunpack.c.l.b16 %v402
    %v442 = vunpack.c.l.b16 %v403
    %v443 = vunpack.c.l.b16 %v404
    %v444 = vunpack.c.l.b16 %v405
    %v445 = vunpack.c.l.b16 %v406
    %v446 = vunpack.c.l.b16 %v407
    %v447 = vpack.c.b16 %v432, %v431
    %v448 = vpack.c.b16 %v434, %v433
    %v449 = vpack.c.b16 %v436, %v435
    %v450 = vpack.c.b16 %v438, %v437
    %v451 = vpack.c.b16 %v440, %v439
    %v452 = vpack.c.b16 %v442, %v441
    %v453 = vpack.c.b16 %v444, %v443
    %v454 = vpack.c.b16 %v446, %v445
    %463 = vmatprep.subr.bf16.mxu0 0
    %464 = vmatpush1.bf16.msra.mxu0 %v447
    %465 = vmatprep.subr.bf16.mxu0 0
    %466 = vmatpush1.bf16.msra.mxu0 %v448
    %467 = vmatprep.subr.bf16.mxu0 0
    %468 = vmatpush1.bf16.msra.mxu0 %v449
    %469 = vmatprep.subr.bf16.mxu0 0
    %470 = vmatpush1.bf16.msra.mxu0 %v450
    %471 = vmatprep.subr.bf16.mxu0 0
    %472 = vmatpush1.bf16.msra.mxu0 %v451
    %473 = vmatprep.subr.bf16.mxu0 0
    %474 = vmatpush1.bf16.msra.mxu0 %v452
    %475 = vmatprep.subr.bf16.mxu0 0
    %476 = vmatpush1.bf16.msra.mxu0 %v453
    %477 = vmatprep.subr.bf16.mxu0 0
    %478 = vmatpush1.bf16.msra.mxu0 %v454
    %479 = vmatprep.subr.bf16.mxu0 0
    %480 = vmatpush1.bf16.msra.mxu0 0
    %481 = vmatprep.subr.bf16.mxu0 0
    %482 = vmatpush1.bf16.msra.mxu0 0
    %483 = vmatprep.subr.bf16.mxu0 0
    %484 = vmatpush1.bf16.msra.mxu0 0
    %485 = vmatprep.subr.bf16.mxu0 0
    %486 = vmatpush1.bf16.msra.mxu0 0
    %487 = vmatprep.subr.bf16.mxu0 0
    %488 = vmatpush1.bf16.msra.mxu0 0
    %489 = vmatprep.subr.bf16.mxu0 0
    %490 = vmatpush1.bf16.msra.mxu0 0
    %491 = vmatprep.subr.bf16.mxu0 0
    %492 = vmatpush1.bf16.msra.mxu0 0
    %493 = vmatprep.subr.bf16.mxu0 0
    %494 = vmatpush1.bf16.msra.mxu0 0
    %495 = vmatprep.mubr.bf16.mxu0 0
    %496 = vmatmul.mubr.bf16.gmra.mrb[0].mxu0 %v391
    %v497 = vpop.f32.mrb[0].mxu0
    %v498 = vadd.f32 %v413, %v497
    %v499 = vpop.f32.mrb[0].mxu0
    %v500 = vpop.f32.mrb[0].mxu0
    %v501 = vadd.f32 %v413, %v500
    %v502 = vpop.f32.mrb[0].mxu0
    %503 = vdwg.mxu0
    %v504 = vpack.c.bf16 %v501, %v498
    %s505 = scalar_lea.vmem [#allocation6], 192
    %v506 = vld [vmem:[%s505] sm:$0xff]
    %v507 = vld [vmem:[%s505 + $0x8] sm:$0xf]
    %v508 = vld [vmem:[%s505 + $0xc] sm:$0xff]
    %v509 = vld [vmem:[%s505 + $0x14] sm:$0xf]
    %v510 = vld [vmem:[%s505 + $0x18] sm:$0xff]
    %v511 = vld [vmem:[%s505 + $0x20] sm:$0xf]
    %v512 = vld [vmem:[%s505 + $0x24] sm:$0xff]
    %v513 = vld [vmem:[%s505 + $0x2c] sm:$0xf]
    %v514 = vld [vmem:[%s505 + $0x30] sm:$0xff]
    %v515 = vld [vmem:[%s505 + $0x38] sm:$0xf]
    %v516 = vld [vmem:[%s505 + $0x3c] sm:$0xff]
    %v517 = vld [vmem:[%s505 + $0x44] sm:$0xf]
    %v518 = vld [vmem:[%s505 + $0x48] sm:$0xff]
    %v519 = vld [vmem:[%s505 + $0x50] sm:$0xf]
    %v520 = vld [vmem:[%s505 + $0x54] sm:$0xff]
    %v521 = vld [vmem:[%s505 + $0x5c] sm:$0xf]
    %v522 = vld [vmem:[%s505 + $0x60] sm:$0xff]
    %v523 = vld [vmem:[%s505 + $0x68] sm:$0xf]
    %v524 = vld [vmem:[%s505 + $0x6c] sm:$0xff]
    %v525 = vld [vmem:[%s505 + $0x74] sm:$0xf]
    %v526 = vld [vmem:[%s505 + $0x78] sm:$0xff]
    %v527 = vld [vmem:[%s505 + $0x80] sm:$0xf]
    %v528 = vld [vmem:[%s505 + $0x84] sm:$0xff]
    %v529 = vld [vmem:[%s505 + $0x8c] sm:$0xf]
    %v530 = vld [vmem:[%s505 + $0x90] sm:$0xff]
    %v531 = vld [vmem:[%s505 + $0x98] sm:$0xf]
    %v532 = vld [vmem:[%s505 + $0x9c] sm:$0xff]
    %v533 = vld [vmem:[%s505 + $0xa4] sm:$0xf]
    %v534 = vld [vmem:[%s505 + $0xa8] sm:$0xff]
    %v535 = vld [vmem:[%s505 + $0xb0] sm:$0xf]
    %v536 = vld [vmem:[%s505 + $0xb4] sm:$0xff]
    %v537 = vld [vmem:[%s505 + $0xbc] sm:$0xf]
    %s538 = scalar_lea.vmem %s2, 3
    %v539 = vld [vmem:[%s538] sm:$0x7]
    %v541 = vlaneseq
    %v542 = vshrl.u32 %v541, 7
    %v543 = vsub.s32 0, %v542
    %v544 = vrot.slane %v539, %v543
    %v545 = vlaneseq
    %v546 = vshrl.u32 %v545, 7
    %v547 = vsub.s32 1, %v546
    %v548 = vrot.slane %v539, %v547
    %v549 = vlaneseq
    %v550 = vshrl.u32 %v549, 7
    %v551 = vsub.s32 2, %v550
    %v552 = vrot.slane %v539, %v551
    %v588 = vunpack.c.l.b16 %v506
    %v589 = vunpack.c.h.b16 %v506
    %v590 = vunpack.c.l.b16 %v507
    %v591 = vunpack.c.l.b16 %v508
    %v592 = vunpack.c.h.b16 %v508
    %v593 = vunpack.c.l.b16 %v509
    %v594 = vunpack.c.l.b16 %v510
    %v595 = vunpack.c.h.b16 %v510
    %v596 = vunpack.c.l.b16 %v511
    %v597 = vunpack.c.l.b16 %v512
    %v598 = vunpack.c.h.b16 %v512
    %v599 = vunpack.c.l.b16 %v513
    %v600 = vunpack.c.l.b16 %v514
    %v601 = vunpack.c.h.b16 %v514
    %v602 = vunpack.c.l.b16 %v515
    %v603 = vunpack.c.l.b16 %v516
    %v604 = vunpack.c.h.b16 %v516
    %v605 = vunpack.c.l.b16 %v517
    %v606 = vunpack.c.l.b16 %v518
    %v607 = vunpack.c.h.b16 %v518
    %v608 = vunpack.c.l.b16 %v519
    %v609 = vunpack.c.l.b16 %v520
    %v610 = vunpack.c.h.b16 %v520
    %v611 = vunpack.c.l.b16 %v521
    %v612 = vunpack.c.l.b16 %v522
    %v613 = vunpack.c.h.b16 %v522
    %v614 = vunpack.c.l.b16 %v523
    %v615 = vunpack.c.l.b16 %v524
    %v616 = vunpack.c.h.b16 %v524
    %v617 = vunpack.c.l.b16 %v525
    %v618 = vunpack.c.l.b16 %v526
    %v619 = vunpack.c.h.b16 %v526
    %v620 = vunpack.c.l.b16 %v527
    %v621 = vunpack.c.l.b16 %v528
    %v622 = vunpack.c.h.b16 %v528
    %v623 = vunpack.c.l.b16 %v529
    %v624 = vunpack.c.l.b16 %v530
    %v625 = vunpack.c.h.b16 %v530
    %v626 = vunpack.c.l.b16 %v531
    %v627 = vunpack.c.l.b16 %v532
    %v628 = vunpack.c.h.b16 %v532
    %v629 = vunpack.c.l.b16 %v533
    %v630 = vunpack.c.l.b16 %v534
    %v631 = vunpack.c.h.b16 %v534
    %v632 = vunpack.c.l.b16 %v535
    %v633 = vunpack.c.l.b16 %v536
    %v634 = vunpack.c.h.b16 %v536
    %v635 = vunpack.c.l.b16 %v537
    %v636 = vpack.c.b16 %v591, %v588
    %v637 = vpack.c.b16 %v592, %v589
    %v638 = vpack.c.b16 %v593, %v590
    %v639 = vpack.c.b16 %v597, %v594
    %v640 = vpack.c.b16 %v598, %v595
    %v641 = vpack.c.b16 %v599, %v596
    %v642 = vpack.c.b16 %v603, %v600
    %v643 = vpack.c.b16 %v604, %v601
    %v644 = vpack.c.b16 %v605, %v602
    %v645 = vpack.c.b16 %v609, %v606
    %v646 = vpack.c.b16 %v610, %v607
    %v647 = vpack.c.b16 %v611, %v608
    %v648 = vpack.c.b16 %v615, %v612
    %v649 = vpack.c.b16 %v616, %v613
    %v650 = vpack.c.b16 %v617, %v614
    %v651 = vpack.c.b16 %v621, %v618
    %v652 = vpack.c.b16 %v622, %v619
    %v653 = vpack.c.b16 %v623, %v620
    %v654 = vpack.c.b16 %v627, %v624
    %v655 = vpack.c.b16 %v628, %v625
    %v656 = vpack.c.b16 %v629, %v626
    %v657 = vpack.c.b16 %v633, %v630
    %v658 = vpack.c.b16 %v634, %v631
    %v659 = vpack.c.b16 %v635, %v632
    %684 = vmatprep.subr.bf16.mxu0 %v637
    %685 = vmatpush1.bf16.msra.mxu0 %v636
    %686 = vmatprep.subr.bf16.mxu0 %v640
    %687 = vmatpush1.bf16.msra.mxu0 %v639
    %688 = vmatprep.subr.bf16.mxu0 %v643
    %689 = vmatpush1.bf16.msra.mxu0 %v642
    %690 = vmatprep.subr.bf16.mxu0 %v646
    %691 = vmatpush1.bf16.msra.mxu0 %v645
    %692 = vmatprep.subr.bf16.mxu0 %v649
    %693 = vmatpush1.bf16.msra.mxu0 %v648
    %694 = vmatprep.subr.bf16.mxu0 %v652
    %695 = vmatpush1.bf16.msra.mxu0 %v651
    %696 = vmatprep.subr.bf16.mxu0 %v655
    %697 = vmatpush1.bf16.msra.mxu0 %v654
    %698 = vmatprep.subr.bf16.mxu0 %v658
    %699 = vmatpush1.bf16.msra.mxu0 %v657
    %700 = vmatprep.subr.bf16.mxu0 0
    %701 = vmatpush1.bf16.msra.mxu0 0
    %702 = vmatprep.subr.bf16.mxu0 0
    %703 = vmatpush1.bf16.msra.mxu0 0
    %704 = vmatprep.subr.bf16.mxu0 0
    %705 = vmatpush1.bf16.msra.mxu0 0
    %706 = vmatprep.subr.bf16.mxu0 0
    %707 = vmatpush1.bf16.msra.mxu0 0
    %708 = vmatprep.subr.bf16.mxu0 0
    %709 = vmatpush1.bf16.msra.mxu0 0
    %710 = vmatprep.subr.bf16.mxu0 0
    %711 = vmatpush1.bf16.msra.mxu0 0
    %712 = vmatprep.subr.bf16.mxu0 0
    %713 = vmatpush1.bf16.msra.mxu0 0
    %714 = vmatprep.subr.bf16.mxu0 0
    %715 = vmatpush1.bf16.msra.mxu0 0
    %716 = vmatprep.mubr.bf16.mxu0 0
    %717 = vmatmul.mubr.bf16.gmra.mrb[0].mxu0 %v504
    %v718 = vpop.f32.mrb[0].mxu0
    %v719 = vadd.f32 %v544, %v718
    %v720 = vpop.f32.mrb[0].mxu0
    %v721 = vadd.f32 %v548, %v720
    %v722 = vpop.f32.mrb[0].mxu0
    %v723 = vadd.f32 %v544, %v722
    %v724 = vpop.f32.mrb[0].mxu0
    %v725 = vadd.f32 %v548, %v724
    %726 = vdwg.mxu0
    %727 = vmatprep.subr.bf16.mxu0 0
    %728 = vmatpush1.bf16.msra.mxu0 %v638
    %729 = vmatprep.subr.bf16.mxu0 0
    %730 = vmatpush1.bf16.msra.mxu0 %v641
    %731 = vmatprep.subr.bf16.mxu0 0
    %732 = vmatpush1.bf16.msra.mxu0 %v644
    %733 = vmatprep.subr.bf16.mxu0 0
    %734 = vmatpush1.bf16.msra.mxu0 %v647
    %735 = vmatprep.subr.bf16.mxu0 0
    %736 = vmatpush1.bf16.msra.mxu0 %v650
    %737 = vmatprep.subr.bf16.mxu0 0
    %738 = vmatpush1.bf16.msra.mxu0 %v653
    %739 = vmatprep.subr.bf16.mxu0 0
    %740 = vmatpush1.bf16.msra.mxu0 %v656
    %741 = vmatprep.subr.bf16.mxu0 0
    %742 = vmatpush1.bf16.msra.mxu0 %v659
    %743 = vmatprep.subr.bf16.mxu0 0
    %744 = vmatpush1.bf16.msra.mxu0 0
    %745 = vmatprep.subr.bf16.mxu0 0
    %746 = vmatpush1.bf16.msra.mxu0 0
    %747 = vmatprep.subr.bf16.mxu0 0
    %748 = vmatpush1.bf16.msra.mxu0 0
    %749 = vmatprep.subr.bf16.mxu0 0
    %750 = vmatpush1.bf16.msra.mxu0 0
    %751 = vmatprep.subr.bf16.mxu0 0
    %752 = vmatpush1.bf16.msra.mxu0 0
    %753 = vmatprep.subr.bf16.mxu0 0
    %754 = vmatpush1.bf16.msra.mxu0 0
    %755 = vmatprep.subr.bf16.mxu0 0
    %756 = vmatpush1.bf16.msra.mxu0 0
    %757 = vmatprep.subr.bf16.mxu0 0
    %758 = vmatpush1.bf16.msra.mxu0 0
    %759 = vmatprep.mubr.bf16.mxu0 0
    %760 = vmatmul.mubr.bf16.gmra.mrb[0].mxu0 %v504
    %v761 = vpop.f32.mrb[0].mxu0
    %v762 = vadd.f32 %v552, %v761
    %v763 = vpop.f32.mrb[0].mxu0
    %v764 = vpop.f32.mrb[0].mxu0
    %v765 = vadd.f32 %v552, %v764
    %v766 = vpop.f32.mrb[0].mxu0
    %767 = vdwg.mxu0
    %v768 = vxor.u32 %v719, 2147483648
    %v769 = vxor.u32 %v723, 2147483648
    %v770 = vmul.f32 %v768, 1.442695
    %v771 = vpow.pop %v770
    %v772 = vmul.f32 %v769, 1.442695
    %v773 = vpow.pop %v772
    %v774 = vadd.f32 %v771, 1.0
    %v775 = vadd.f32 %v773, 1.0
    %v776 = vrcp.pop %v774
    %v777 = vmul.f32 1.0, %v776
    %v778 = vrcp.pop %v775
    %v779 = vmul.f32 1.0, %v778
    %v780 = vtanh.pop %v721
    %v781 = vtanh.pop %v725
    %v782 = vxor.u32 %v762, 2147483648
    %v783 = vxor.u32 %v765, 2147483648
    %v784 = vmul.f32 %v782, 1.442695
    %v785 = vpow.pop %v784
    %v786 = vmul.f32 %v783, 1.442695
    %v787 = vpow.pop %v786
    %v788 = vadd.f32 %v785, 1.0
    %v789 = vadd.f32 %v787, 1.0
    %v790 = vrcp.pop %v788
    %v791 = vmul.f32 1.0, %v790
    %v792 = vrcp.pop %v789
    %v793 = vmul.f32 1.0, %v792
    %v794 = vmul.f32 %v777, %v780
    %v795 = vmul.f32 %v779, %v781
    %v796 = vtanh.pop %v794
    %v797 = vtanh.pop %v795
    %v798 = vmul.f32 %v791, %v796
    %v799 = vmul.f32 %v793, %v797
    %800 = vadd.xlane.f32.xlu0 %v798
    %v801 = vpop.xlane.xlu0 %800
    %802 = vadd.xlane.f32.xlu0 %v799
    %v803 = vpop.xlane.xlu0 %802
    %v804 = vmul.f32 %v798, %v798
    %v805 = vmul.f32 %v799, %v799
    %806 = vadd.xlane.f32.xlu0 %v804
    %v807 = vpop.xlane.xlu0 %806
    %808 = vadd.xlane.f32.xlu0 %v805
    %v809 = vpop.xlane.xlu0 %808
    %v810 = vmul.f32 %v801, 0.03125
    %v811 = vmul.f32 %v803, 0.03125
    %v812 = vmul.f32 %v807, 0.03125
    %v813 = vmul.f32 %v809, 0.03125
    %v814 = vmul.f32 %v810, %v810
    %v815 = vmul.f32 %v811, %v811
    %v816 = vsub.f32 %v812, %v814
    %v817 = vsub.f32 %v813, %v815
    %v818 = vsub.f32 %v798, %v810
    %v819 = vsub.f32 %v799, %v811
    %v820 = vadd.f32 %v816, 1e-05
    %v821 = vadd.f32 %v817, 1e-05
    %v822 = vrsqrt.pop %v820
    %v823 = vrsqrt.pop %v821
    %v824 = vmul.f32 %v818, %v822
    %v825 = vmul.f32 %v819, %v823
    %v826 = vpack.c.bf16 %v825, %v824
    %s827 = scalar_lea.vmem [#allocation8], 64
    %v828 = vld [vmem:[%s827] sm:$0xf]
    %v829 = vld [vmem:[%s827 + $0x4] sm:$0xf]
    %v830 = vld [vmem:[%s827 + $0x8] sm:$0xf]
    %v831 = vld [vmem:[%s827 + $0xc] sm:$0xf]
    %v832 = vld [vmem:[%s827 + $0x10] sm:$0xf]
    %v833 = vld [vmem:[%s827 + $0x14] sm:$0xf]
    %v834 = vld [vmem:[%s827 + $0x18] sm:$0xf]
    %v835 = vld [vmem:[%s827 + $0x1c] sm:$0xf]
    %v836 = vld [vmem:[%s827 + $0x20] sm:$0xf]
    %v837 = vld [vmem:[%s827 + $0x24] sm:$0xf]
    %v838 = vld [vmem:[%s827 + $0x28] sm:$0xf]
    %v839 = vld [vmem:[%s827 + $0x2c] sm:$0xf]
    %v840 = vld [vmem:[%s827 + $0x30] sm:$0xf]
    %v841 = vld [vmem:[%s827 + $0x34] sm:$0xf]
    %v842 = vld [vmem:[%s827 + $0x38] sm:$0xf]
    %v843 = vld [vmem:[%s827 + $0x3c] sm:$0xf]
    %s844 = scalar_lea.vmem %s4, 1
    %v845 = vld [vmem:[%s844] sm:$0x1]
    %v847 = vlaneseq
    %v848 = vshrl.u32 %v847, 7
    %v849 = vsub.s32 0, %v848
    %v850 = vrot.slane %v845, %v849
    %v868 = vunpack.c.l.b16 %v828
    %v869 = vunpack.c.l.b16 %v829
    %v870 = vunpack.c.l.b16 %v830
    %v871 = vunpack.c.l.b16 %v831
    %v872 = vunpack.c.l.b16 %v832
    %v873 = vunpack.c.l.b16 %v833
    %v874 = vunpack.c.l.b16 %v834
    %v875 = vunpack.c.l.b16 %v835
    %v876 = vunpack.c.l.b16 %v836
    %v877 = vunpack.c.l.b16 %v837
    %v878 = vunpack.c.l.b16 %v838
    %v879 = vunpack.c.l.b16 %v839
    %v880 = vunpack.c.l.b16 %v840
    %v881 = vunpack.c.l.b16 %v841
    %v882 = vunpack.c.l.b16 %v842
    %v883 = vunpack.c.l.b16 %v843
    %v884 = vpack.c.b16 %v869, %v868
    %v885 = vpack.c.b16 %v871, %v870
    %v886 = vpack.c.b16 %v873, %v872
    %v887 = vpack.c.b16 %v875, %v874
    %v888 = vpack.c.b16 %v877, %v876
    %v889 = vpack.c.b16 %v879, %v878
    %v890 = vpack.c.b16 %v881, %v880
    %v891 = vpack.c.b16 %v883, %v882
    %900 = vmatprep.subr.bf16.mxu0 0
    %901 = vmatpush1.bf16.msra.mxu0 %v884
    %902 = vmatprep.subr.bf16.mxu0 0
    %903 = vmatpush1.bf16.msra.mxu0 %v885
    %904 = vmatprep.subr.bf16.mxu0 0
    %905 = vmatpush1.bf16.msra.mxu0 %v886
    %906 = vmatprep.subr.bf16.mxu0 0
    %907 = vmatpush1.bf16.msra.mxu0 %v887
    %908 = vmatprep.subr.bf16.mxu0 0
    %909 = vmatpush1.bf16.msra.mxu0 %v888
    %910 = vmatprep.subr.bf16.mxu0 0
    %911 = vmatpush1.bf16.msra.mxu0 %v889
    %912 = vmatprep.subr.bf16.mxu0 0
    %913 = vmatpush1.bf16.msra.mxu0 %v890
    %914 = vmatprep.subr.bf16.mxu0 0
    %915 = vmatpush1.bf16.msra.mxu0 %v891
    %916 = vmatprep.subr.bf16.mxu0 0
    %917 = vmatpush1.bf16.msra.mxu0 0
    %918 = vmatprep.subr.bf16.mxu0 0
    %919 = vmatpush1.bf16.msra.mxu0 0
    %920 = vmatprep.subr.bf16.mxu0 0
    %921 = vmatpush1.bf16.msra.mxu0 0
    %922 = vmatprep.subr.bf16.mxu0 0
    %923 = vmatpush1.bf16.msra.mxu0 0
    %924 = vmatprep.subr.bf16.mxu0 0
    %925 = vmatpush1.bf16.msra.mxu0 0
    %926 = vmatprep.subr.bf16.mxu0 0
    %927 = vmatpush1.bf16.msra.mxu0 0
    %928 = vmatprep.subr.bf16.mxu0 0
    %929 = vmatpush1.bf16.msra.mxu0 0
    %930 = vmatprep.subr.bf16.mxu0 0
    %931 = vmatpush1.bf16.msra.mxu0 0
    %932 = vmatprep.mubr.bf16.mxu0 0
    %933 = vmatmul.mubr.bf16.gmra.mrb[0].mxu0 %v826
    %v934 = vpop.f32.mrb[0].mxu0
    %v935 = vadd.f32 %v850, %v934
    %v936 = vpop.f32.mrb[0].mxu0
    %v937 = vpop.f32.mrb[0].mxu0
    %v938 = vadd.f32 %v850, %v937
    %v939 = vpop.f32.mrb[0].mxu0
    %940 = vdwg.mxu0
    %v941 = vpack.c.bf16 %v938, %v935
    %942 = vst [vmem:[#allocation2] sm:$0xff] %v941
    // Predicated region
    $region38: #{tpu_custom_call.1} parent=1 // pred_check
      %p943 = pneg %p63
    $region39: #{tpu_custom_call.1} parent=1 // pred_check_branch
      %945 = sbr.rel (%p943) target = $region41
    $region40: #{tpu_custom_call.1} parent=1 // pred_region
      %946 = vst [vmem:[#allocation9] sm:$0xff] %v935
      %947 = vst [vmem:[#allocation9 + $0x8] sm:$0xff] %v938
    $region41: #{tpu_custom_call.1} parent=1 // pred_fallthru
      _
    // Predicated region
    $region42: #{tpu_custom_call.1} parent=1 // pred_check
      _
    $region43: #{tpu_custom_call.1} parent=1 // pred_check_branch
      %949 = sbr.rel (0) target = $region45
    $region44: #{tpu_custom_call.1} parent=1 // pred_region
      %s951 = ssub.s32 256, 256
      %952 = vsyncadd [#allocation5], %s951
      %s953 = sshll.u32 [#allocation9], 4
      %s954 = int_to_ptr.vmem [resolvable:$true] %s953
      %959 = dma.vmem_to_hbm [thread:$0]  %s954, 256, %s5, [#allocation5], 128, 128, 8
    $region45: #{tpu_custom_call.1} parent=1 // pred_fallthru
      _
    // Predicated region
    $region46: #{tpu_custom_call.1} parent=1 // pred_check
      _
    $region47: #{tpu_custom_call.1} parent=1 // pred_check_branch
      %961 = sbr.rel (0) target = $region49
    $region48: #{tpu_custom_call.1} parent=1 // pred_region
      %962 = dma.done [#allocation5], 256
    $region49: #{tpu_custom_call.1} parent=1 // pred_fallthru
      _
    %963 = vsyncpa [#allocation4], 1
    %964 = vsyncpa [#allocation7], 1
    %965 = vsyncpa [#allocation5], 1

</llo_original>
